<compile_context>
chip_gen: v6e
topology: v6e:2x2x1
jax: 0.10.0
libtpu: 0.0.40
codegen_flags: <defaults>
</compile_context>

<pallas_src>
import functools

import jax
import jax.numpy as jnp
from jax.experimental import pallas as pl
from jax.experimental.pallas import tpu as pltpu


def _tacotron2_mel_loss_kernel(len_ref,        # SMEM int32 (B,)  (scalar prefetch)
                               mel_out_ref,    # VMEM (1, Tt, M)  native dtype
                               mel_post_ref,   # VMEM (1, Tt, M)
                               mel_tgt_ref,    # VMEM (1, M, Tt)  NATIVE target layout
                               out_ref,        # VMEM (1, 1, 1) f32 per-batch partial
                               acc_ref,        # VMEM (8, M) f32 scratch accumulator
                               *, t_tile, t_total, inv_n_mel):
    b = pl.program_id(0)
    t = pl.program_id(1)

    # Zero this batch row's vector accumulator on its first time tile.
    @pl.when(t == 0)
    def _init():
        acc_ref[...] = jnp.zeros_like(acc_ref)

    m = mel_out_ref.shape[2]

    # ---- masked squared-error partial for this (batch row, time tile) ------
    length = jnp.minimum(len_ref[b], t_total)                    # scalar int32
    t_idx = t * t_tile + jax.lax.broadcasted_iota(
        jnp.int32, mel_out_ref.shape, 1)                         # global time idx
    valid = t_idx < length          # also masks OOB-padded rows of the last tile

    mo = mel_out_ref[...].astype(jnp.float32)                    # (1, Tt, M)
    mp = mel_post_ref[...].astype(jnp.float32)                   # (1, Tt, M)
    # In-kernel transpose of the target tile (XLU slot, idle in this
    # memory-bound kernel): [1, M, Tt] -> [1, Tt, M].
    mt = jnp.transpose(mel_tgt_ref[...].astype(jnp.float32), (0, 2, 1))

    # masked_fill on both pred and target then MSE == where(valid, pred-tgt, 0)^2
    d1 = jnp.where(valid, mo - mt, 0.0)
    d2 = jnp.where(valid, mp - mt, 0.0)
    sq = d1 * d1 + d2 * d2                                       # (1, Tt, M)

    if t_tile % 8 == 0:
        # Sublane-chunked reduce over time: pure VALU vreg adds into (8, M).
        acc_ref[...] += jnp.sum(sq.reshape(t_tile // 8, 8, m), axis=0)
    else:
        # Rare fallback (full-dim tile whose length is not a multiple of 8).
        acc_ref[0:1, :] += jnp.sum(sq, axis=1)                   # (1, M)

    # Single cross-lane reduce + output store only on the last time tile.
    @pl.when(t == pl.num_programs(1) - 1)
    def _finalize():
        total = jnp.sum(acc_ref[...]) * inv_n_mel
        out_ref[...] = jnp.reshape(total, (1, 1, 1))


def tacotron2_loss(model_outputs, targets, *, t_tile=2048):
    """model_outputs = (mel_out_postnet [B,T,M], mel_out [B,T,M], gate_out [B,T], _)
       targets       = (mel_target [B,M,T], gate_target [B,T], mel_lengths [B])"""
    mel_out_postnet, mel_out, gate_out, _ = model_outputs
    mel_target, gate_target, mel_lengths = targets

    B, T, M = mel_out.shape

    # Time tile: full dim when it fits (single tile); otherwise a multiple of
    # 128 so the target's [1, M, t_tile] block keeps a lane-aligned last dim.
    if T <= t_tile:
        t_tile = T
    else:
        t_tile = max(128, (t_tile // 128) * 128)
    nt = pl.cdiv(T, t_tile)

    lens = mel_lengths.astype(jnp.int32).reshape(B)

    kernel = functools.partial(
        _tacotron2_mel_loss_kernel,
        t_tile=t_tile,
        t_total=T,
        inv_n_mel=1.0 / float(B * M * T))   # padded positions count in denominator

    pred_spec = pl.BlockSpec((1, t_tile, M), lambda b, t, lens: (b, t, 0))
    tgt_spec = pl.BlockSpec((1, M, t_tile), lambda b, t, lens: (b, 0, t))

    partials = pl.pallas_call(
        kernel,
        out_shape=jax.ShapeDtypeStruct((B, 1, 1), jnp.float32),
        grid_spec=pltpu.PrefetchScalarGridSpec(
            num_scalar_prefetch=1,
            grid=(B, nt),
            in_specs=[pred_spec, pred_spec, tgt_spec],
            out_specs=pl.BlockSpec((1, 1, 1), lambda b, t, lens: (b, 0, 0)),
            scratch_shapes=[pltpu.VMEM((8, M), jnp.float32)]),
        compiler_params=pltpu.CompilerParams(
            dimension_semantics=("parallel", "arbitrary"),
            vmem_limit_bytes=32 * 1024 * 1024),
    )(lens, mel_out, mel_out_postnet, mel_target)

    loss_mel = jnp.sum(partials)

    # Gate BCE-with-logits on the tiny [B, T] logits: plain XLA in the wrapper
    # (per perf review — not worth two resident VMEM blocks in the kernel).
    x = gate_out.astype(jnp.float32)
    y = gate_target.astype(jnp.float32)
    bce = jnp.maximum(x, 0.0) - x * y + jnp.log1p(jnp.exp(-jnp.abs(x)))
    return loss_mel + jnp.mean(bce)


def _reference_loss(model_outputs, targets):
    """Pure-JAX reference with identical semantics (for the self-test)."""
    mel_out_postnet, mel_out, gate_out, _ = model_outputs
    mel_target, gate_target, mel_lengths = targets
    B, M, T = mel_target.shape
    valid = (jnp.arange(T)[None, :] < mel_lengths[:, None])[:, None, :]
    mo = jnp.transpose(mel_out, (0, 2, 1)).astype(jnp.float32)
    mp = jnp.transpose(mel_out_postnet, (0, 2, 1)).astype(jnp.float32)
    mt = mel_target.astype(jnp.float32)
    d1 = jnp.where(valid, mo - mt, 0.0)
    d2 = jnp.where(valid, mp - mt, 0.0)
    loss_mel = jnp.mean(d1 * d1) + jnp.mean(d2 * d2)
    x = gate_out.astype(jnp.float32)
    y = gate_target.astype(jnp.float32)
    bce = jnp.maximum(x, 0.0) - x * y + jnp.log1p(jnp.exp(-jnp.abs(x)))
    return loss_mel + jnp.mean(bce)


if __name__ == "__main__":
    key = jax.random.PRNGKey(0)

    def make_case(k, B, T, M, lengths):
        k1, k2, k3, k4, k5 = jax.random.split(k, 5)
        mel_out = jax.random.normal(k1, (B, T, M), dtype=jnp.float32)
        mel_out_postnet = jax.random.normal(k2, (B, T, M), dtype=jnp.float32)
        gate_out = jax.random.normal(k3, (B, T), dtype=jnp.float32)
        mel_target = jax.random.normal(k4, (B, M, T), dtype=jnp.float32)
        gate_target = (jax.random.uniform(k5, (B, T)) < 0.5).astype(jnp.float32)
        mel_lengths = jnp.array(lengths, dtype=jnp.int32)
        return ((mel_out_postnet, mel_out, gate_out, None),
                (mel_target, gate_target, mel_lengths))

    k1, k2, k3 = jax.random.split(key, 3)

    # Case 1: single full-dim time tile (Tt == T), n_mels = 80.
    mo1, tg1 = make_case(k1, B=2, T=48, M=80, lengths=[48, 30])
    loss1 = tacotron2_loss(mo1, tg1)
    jax.block_until_ready(loss1)
    ref1 = _reference_loss(mo1, tg1)
    assert jnp.allclose(loss1, ref1, rtol=1e-5, atol=1e-5), (loss1, ref1)

    # Case 2: multiple 128-wide time tiles with a ragged last tile (exercises
    # the grid, OOB masking, the in-kernel target transpose and accumulation).
    mo2, tg2 = make_case(k2, B=2, T=320, M=80, lengths=[320, 200])
    loss2 = tacotron2_loss(mo2, tg2, t_tile=128)
    jax.block_until_ready(loss2)
    ref2 = _reference_loss(mo2, tg2)
    assert jnp.allclose(loss2, ref2, rtol=1e-5, atol=1e-5), (loss2, ref2)

    # Case 3: T not a multiple of 8 (exercises the fallback accumulation path).
    mo3, tg3 = make_case(k3, B=2, T=20, M=80, lengths=[20, 13])
    loss3 = tacotron2_loss(mo3, tg3)
    jax.block_until_ready(loss3)
    ref3 = _reference_loss(mo3, tg3)
    assert jnp.allclose(loss3, ref3, rtol=1e-5, atol=1e-5), (loss3, ref3)

    print("KERNEL_OK")
</pallas_src>

<mosaic_0001>
module attributes {stable_mosaic.version = 11 : i64} {
  func.func @_tacotron2_mel_loss_kernel(%arg0: i32, %arg1: i32, %arg2: memref<2xi32, #tpu.memory_space<smem>>, %arg3: memref<1x48x80xf32, #tpu.memory_space<vmem>>, %arg4: memref<1x48x80xf32, #tpu.memory_space<vmem>>, %arg5: memref<1x80x48xf32, #tpu.memory_space<vmem>>, %arg6: memref<1x1x1xf32, #tpu.memory_space<vmem>>, %arg7: memref<8x80xf32, #tpu.memory_space<vmem>>) attributes {dimension_semantics = [#tpu.dimension_semantics<parallel>, #tpu.dimension_semantics<arbitrary>], iteration_bounds = array<i64: 2, 1>, scalar_prefetch = 1 : i64, scratch_operands = 1 : i64, tpu.core_type = #tpu.core_type<tc>, window_params = [{transform_indices = @transform_0, window_bounds = array<i64: 1, 48, 80>}, {transform_indices = @transform_1, window_bounds = array<i64: 1, 48, 80>}, {transform_indices = @transform_2, window_bounds = array<i64: 1, 80, 48>}, {transform_indices = @transform_3, window_bounds = array<i64: 1, 1, 1>}]} {
    %c0_i32 = arith.constant 0 : i32
    %0 = arith.cmpi eq, %arg1, %c0_i32 : i32
    %1 = arith.extui %0 : i1 to i32
    %c0_i32_0 = arith.constant 0 : i32
    %2 = arith.cmpi ne, %1, %c0_i32_0 : i32
    scf.if %2 {
      %cst_18 = arith.constant 0.000000e+00 : f32
      %33 = vector.broadcast %cst_18 : f32 to vector<8x80xf32>
      %c0_19 = arith.constant 0 : index
      %c0_20 = arith.constant 0 : index
      %34 = vector.load %arg7[%c0_19, %c0_20] : memref<8x80xf32, #tpu.memory_space<vmem>>, vector<8x80xf32>
      tpu.vector_store %arg7[%c0_19, %c0_20], %33 {strides = array<i32>} : memref<8x80xf32, #tpu.memory_space<vmem>>, vector<8x80xf32>,
    } else {
    }
    %3 = arith.index_cast %arg0 : i32 to index
    %4 = memref.load %arg2[%3] : memref<2xi32, #tpu.memory_space<smem>>
    %c48_i32 = arith.constant 48 : i32
    %5 = arith.minsi %4, %c48_i32 : i32
    %c48_i32_1 = arith.constant 48 : i32
    %6 = arith.muli %arg1, %c48_i32_1 : i32
    %7 = tpu.iota {dimensions = array<i32: 1>} : vector<1x48x80xi32>
    %8 = vector.broadcast %6 : i32 to vector<1x48x80xi32>
    %9 = arith.addi %8, %7 : vector<1x48x80xi32>
    %10 = vector.broadcast %5 : i32 to vector<1x48x80xi32>
    %11 = arith.cmpi slt, %9, %10 : vector<1x48x80xi32>
    %c0 = arith.constant 0 : index
    %c0_2 = arith.constant 0 : index
    %c0_3 = arith.constant 0 : index
    %12 = vector.load %arg3[%c0, %c0_2, %c0_3] : memref<1x48x80xf32, #tpu.memory_space<vmem>>, vector<1x48x80xf32>
    %c0_4 = arith.constant 0 : index
    %c0_5 = arith.constant 0 : index
    %c0_6 = arith.constant 0 : index
    %13 = vector.load %arg4[%c0_4, %c0_5, %c0_6] : memref<1x48x80xf32, #tpu.memory_space<vmem>>, vector<1x48x80xf32>
    %c0_7 = arith.constant 0 : index
    %c0_8 = arith.constant 0 : index
    %c0_9 = arith.constant 0 : index
    %14 = vector.load %arg5[%c0_7, %c0_8, %c0_9] : memref<1x80x48xf32, #tpu.memory_space<vmem>>, vector<1x80x48xf32>
    %15 = tpu.transpose %14, [0, 2, 1] : vector<1x80x48xf32> -> vector<1x48x80xf32>
    %16 = arith.subf %12, %15 : vector<1x48x80xf32>
    %cst = arith.constant 0.000000e+00 : f32
    %17 = vector.broadcast %cst : f32 to vector<1x48x80xf32>
    %18 = arith.select %11, %16, %17 : vector<1x48x80xi1>, vector<1x48x80xf32>
    %19 = arith.subf %13, %15 : vector<1x48x80xf32>
    %cst_10 = arith.constant 0.000000e+00 : f32
    %20 = vector.broadcast %cst_10 : f32 to vector<1x48x80xf32>
    %21 = arith.select %11, %19, %20 : vector<1x48x80xi1>, vector<1x48x80xf32>
    %22 = arith.mulf %18, %18 : vector<1x48x80xf32>
    %23 = arith.mulf %21, %21 : vector<1x48x80xf32>
    %24 = arith.addf %22, %23 : vector<1x48x80xf32>
    %c0_11 = arith.constant 0 : index
    %c0_12 = arith.constant 0 : index
    %25 = vector.load %arg7[%c0_11, %c0_12] : memref<8x80xf32, #tpu.memory_space<vmem>>, vector<8x80xf32>
    %26 = vector.shape_cast %24 : vector<1x48x80xf32> to vector<6x8x80xf32>
    %cst_13 = arith.constant dense<0.000000e+00> : vector<8x80xf32>
    %27 = vector.multi_reduction <add>, %26, %cst_13 [0] : vector<6x8x80xf32> to vector<8x80xf32>
    %28 = arith.addf %25, %27 : vector<8x80xf32>
    %c0_14 = arith.constant 0 : index
    %c0_15 = arith.constant 0 : index
    %29 = vector.load %arg7[%c0_14, %c0_15] : memref<8x80xf32, #tpu.memory_space<vmem>>, vector<8x80xf32>
    tpu.vector_store %arg7[%c0_14, %c0_15], %28 {strides = array<i32>} : memref<8x80xf32, #tpu.memory_space<vmem>>, vector<8x80xf32>,
    %c0_i32_16 = arith.constant 0 : i32
    %30 = arith.cmpi eq, %arg1, %c0_i32_16 : i32
    %31 = arith.extui %30 : i1 to i32
    %c0_i32_17 = arith.constant 0 : i32
    %32 = arith.cmpi ne, %31, %c0_i32_17 : i32
    scf.if %32 {
      %c0_18 = arith.constant 0 : index
      %c0_19 = arith.constant 0 : index
      %33 = vector.load %arg7[%c0_18, %c0_19] : memref<8x80xf32, #tpu.memory_space<vmem>>, vector<8x80xf32>
      %34 = vector.shape_cast %33 : vector<8x80xf32> to vector<1x8x80xf32>
      %cst_20 = arith.constant dense<0.000000e+00> : vector<1xf32>
      %35 = vector.multi_reduction <add>, %34, %cst_20 [1, 2] : vector<1x8x80xf32> to vector<1xf32>
      %36 = vector.shape_cast %35 : vector<1xf32> to vector<1x1x1xf32>
      %37 = vector.extract %36[0, 0, 0] : f32 from vector<1x1x1xf32>
      %cst_21 = arith.constant 1.3020834E-4 : f32
      %38 = arith.mulf %37, %cst_21 : f32
      %39 = vector.broadcast %38 : f32 to vector<1x1x1xf32>
      %c0_22 = arith.constant 0 : index
      %c0_23 = arith.constant 0 : index
      %c0_24 = arith.constant 0 : index
      %40 = vector.load %arg6[%c0_22, %c0_23, %c0_24] : memref<1x1x1xf32, #tpu.memory_space<vmem>>, vector<1x1x1xf32>
      tpu.vector_store %arg6[%c0_22, %c0_23, %c0_24], %39 {strides = array<i32>} : memref<1x1x1xf32, #tpu.memory_space<vmem>>, vector<1x1x1xf32>,
    } else {
    }
    return
  }
  func.func @transform_0(%arg0: i32, %arg1: i32, %arg2: memref<2xi32, #tpu.memory_space<smem>>) -> (i32, i32, i32) {
    %c0_i32 = arith.constant 0 : i32
    %c0_i32_0 = arith.constant 0 : i32
    return %arg0, %arg1, %c0_i32 : i32, i32, i32
  }
  func.func @transform_1(%arg0: i32, %arg1: i32, %arg2: memref<2xi32, #tpu.memory_space<smem>>) -> (i32, i32, i32) {
    %c0_i32 = arith.constant 0 : i32
    %c0_i32_0 = arith.constant 0 : i32
    return %arg0, %arg1, %c0_i32 : i32, i32, i32
  }
  func.func @transform_2(%arg0: i32, %arg1: i32, %arg2: memref<2xi32, #tpu.memory_space<smem>>) -> (i32, i32, i32) {
    %c0_i32 = arith.constant 0 : i32
    %c0_i32_0 = arith.constant 0 : i32
    return %arg0, %c0_i32, %arg1 : i32, i32, i32
  }
  func.func @transform_3(%arg0: i32, %arg1: i32, %arg2: memref<2xi32, #tpu.memory_space<smem>>) -> (i32, i32, i32) {
    %c0_i32 = arith.constant 0 : i32
    %c0_i32_0 = arith.constant 0 : i32
    %c0_i32_1 = arith.constant 0 : i32
    return %arg0, %c0_i32, %c0_i32_0 : i32, i32, i32
  }
}

</mosaic_0001>

<llo_original>
// kernel: tpu_custom_call.1
$region0: #{tpu_custom_call.1}
  #allocation0 [shape = 'u32[]', space=smem, size = 0x4, offset = 0x4, fixed_abs, tag = 'smem constant byte address 0x4 - core index']
  #allocation1 [shape = 'u32[144,128]{1,0:T(1,128)}', space=vmem, size = 0x12000, scoped, tag = 'internal scratch']
  #allocation2 [shape = 'f32[8,80]{1,0:T(8,128)}', space=vmem, size = 0x1000, scoped, tag = 'scratch operand']
  #allocation3 [shape = 's32[1]{0}', space=sflag, size = 0x4, scoped, tag = 'scoped memory for tpu_custom_call.1']
  #allocation4 [shape = 'u8[512]{0}', space=smem, size = 0x200, scoped, tag = 'prefetched SMEM operand 0']
  %s0 = inlined_call_operand.vmem [shape: s32[2], index: 0, kind: input, shape index: {}]
  %s1 = inlined_call_operand.vmem [shape: f32[2,48,80], index: 1, kind: input, shape index: {}]
  %s2 = inlined_call_operand.vmem [shape: f32[2,48,80], index: 2, kind: input, shape index: {}]
  %s3 = inlined_call_operand.vmem [shape: f32[2,80,48], index: 3, kind: input, shape index: {}]
  %s4 = inlined_call_operand.vmem [shape: f32[2,1,1], index: 4, kind: output, shape index: {}]
  %s5 = sld [smem:[#allocation0]]
  $region53: #{tpu_custom_call.1} parent=0
    _
  %s7 = ssub.s32 1, %s5
  %s8 = scalar_select 0, %s7, %s5
  %s9 = sshll.u32 %s0, 4
  %s10 = int_to_ptr.vmem [resolvable:$true] %s9
  %12 = dma.vmem_to_smem %s10, 16, [#allocation4], [#allocation3]
  %13 = dma.done [#allocation3], 16
  %14 = sfence
  loop: start=0, step=1, limit=4
  $region2: #{tpu_custom_call.1} parent=0 // loop_pre_header
    _
  $region3: #{tpu_custom_call.1} parent=0 // loop_header
    %s16 = sphi 0, %s20
    %p17 = scmp.ge.s32.totalorder %s16, 4
    %s23 = sphi 0, %s35
    %s24 = sphi 0, %s31
    %s25 = sphi 0, %s23
    %s26 = sphi 0, %s24
    %s27 = sphi 0, %s25
    %s28 = sphi 0, %s26
    %s40 = sphi 0, %s42
    %s43 = sphi 0, %s40
    %s44 = sphi 0, %s43
    %s60 = sphi 0, %s44
    %s68 = sphi 0, %s70
    %s71 = sphi 0, %s68
    %s72 = sphi 0, %s71
    %s88 = sphi 0, %s72
    %s96 = sphi 0, %s98
    %s99 = sphi 0, %s96
    %s100 = sphi 0, %s99
    %s116 = sphi 0, %s100
    %s122 = sphi 0, %s124
    %s125 = sphi 0, %s122
    %s126 = sphi 0, %s125
    %s142 = sphi 0, %s126
  $region4: #{tpu_custom_call.1} parent=0 // loop_header_branch
    %19 = sbr.rel (%p17) target = $region8
  $region5: #{tpu_custom_call.1} parent=0 // loop_body
    %s21 = ssub.s32 %s16, 1
    %s22 = ssub.s32 %s16, 2
    %s29 = sadd.s32 1, %s24
    %p30 = scmp.ge.s32.totalorder %s29, 1
    %s31 = scalar_select %p30, 0, %s29
    %s32 = sadd.s32 1, %s23
    %s33 = scalar_select %p30, %s32, %s23
    %p34 = scmp.ge.s32.totalorder %s33, 2
    %s35 = scalar_select %p34, 0, %s33
    %s36 = ssub.s32 %s23, %s35
    %s37 = ssub.s32 %s24, %s31
    %s38 = sor.u32 %s36, %s37
    %p39 = scmp.eq.s32.totalorder %s38, 0
    %s41 = sadd.s32 %s40, 1
    %s42 = scalar_select %p39, %s40, %s41
    %p45 = pneg %p39
    %p46 = scmp.eq.s32.totalorder %s16, 1
    %p47 = por %p45, %p46
    %p48 = scmp.ne.s32.totalorder %s40, %s43
    %p49 = scmp.eq.s32.totalorder %s16, 0
    %p50 = por %p48, %p49
    %p51 = scmp.ne.s32.totalorder %s40, %s43
    %p52 = scmp.eq.s32.totalorder %s21, 1
    %p53 = por %p51, %p52
    %p54 = scmp.ne.s32.totalorder %s43, %s44
    %p55 = scmp.eq.s32.totalorder %s21, 0
    %p56 = por %p54, %p55
    %p57 = scmp.ne.s32.totalorder %s43, %s44
    %p58 = scmp.eq.s32.totalorder %s22, 1
    %p59 = por %p57, %p58
    %p61 = scmp.ne.s32.totalorder %s44, %s60
    %p62 = scmp.eq.s32.totalorder %s22, 0
    %p63 = por %p61, %p62
    %s64 = ssub.s32 %s23, %s35
    %s65 = ssub.s32 %s24, %s31
    %s66 = sor.u32 %s64, %s65
    %p67 = scmp.eq.s32.totalorder %s66, 0
    %s69 = sadd.s32 %s68, 1
    %s70 = scalar_select %p67, %s68, %s69
    %p73 = pneg %p67
    %p74 = scmp.eq.s32.totalorder %s16, 1
    %p75 = por %p73, %p74
    %p76 = scmp.ne.s32.totalorder %s68, %s71
    %p77 = scmp.eq.s32.totalorder %s16, 0
    %p78 = por %p76, %p77
    %p79 = scmp.ne.s32.totalorder %s68, %s71
    %p80 = scmp.eq.s32.totalorder %s21, 1
    %p81 = por %p79, %p80
    %p82 = scmp.ne.s32.totalorder %s71, %s72
    %p83 = scmp.eq.s32.totalorder %s21, 0
    %p84 = por %p82, %p83
    %p85 = scmp.ne.s32.totalorder %s71, %s72
    %p86 = scmp.eq.s32.totalorder %s22, 1
    %p87 = por %p85, %p86
    %p89 = scmp.ne.s32.totalorder %s72, %s88
    %p90 = scmp.eq.s32.totalorder %s22, 0
    %p91 = por %p89, %p90
    %s92 = ssub.s32 %s23, %s35
    %s93 = ssub.s32 %s24, %s31
    %s94 = sor.u32 %s92, %s93
    %p95 = scmp.eq.s32.totalorder %s94, 0
    %s97 = sadd.s32 %s96, 1
    %s98 = scalar_select %p95, %s96, %s97
    %p101 = pneg %p95
    %p102 = scmp.eq.s32.totalorder %s16, 1
    %p103 = por %p101, %p102
    %p104 = scmp.ne.s32.totalorder %s96, %s99
    %p105 = scmp.eq.s32.totalorder %s16, 0
    %p106 = por %p104, %p105
    %p107 = scmp.ne.s32.totalorder %s96, %s99
    %p108 = scmp.eq.s32.totalorder %s21, 1
    %p109 = por %p107, %p108
    %p110 = scmp.ne.s32.totalorder %s99, %s100
    %p111 = scmp.eq.s32.totalorder %s21, 0
    %p112 = por %p110, %p111
    %p113 = scmp.ne.s32.totalorder %s99, %s100
    %p114 = scmp.eq.s32.totalorder %s22, 1
    %p115 = por %p113, %p114
    %p117 = scmp.ne.s32.totalorder %s100, %s116
    %p118 = scmp.eq.s32.totalorder %s22, 0
    %p119 = por %p117, %p118
    %s120 = ssub.s32 %s23, %s35
    %p121 = scmp.eq.s32.totalorder %s120, 0
    %s123 = sadd.s32 %s122, 1
    %s124 = scalar_select %p121, %s122, %s123
    %p127 = pneg %p121
    %p128 = scmp.eq.s32.totalorder %s16, 1
    %p129 = por %p127, %p128
    %p130 = scmp.ne.s32.totalorder %s122, %s125
    %p131 = scmp.eq.s32.totalorder %s16, 0
    %p132 = por %p130, %p131
    %p133 = scmp.ne.s32.totalorder %s122, %s125
    %p134 = scmp.eq.s32.totalorder %s21, 1
    %p135 = por %p133, %p134
    %p136 = scmp.ne.s32.totalorder %s125, %s126
    %p137 = scmp.eq.s32.totalorder %s21, 0
    %p138 = por %p136, %p137
    %p139 = scmp.ne.s32.totalorder %s125, %s126
    %p140 = scmp.eq.s32.totalorder %s22, 1
    %p141 = por %p139, %p140
    %p143 = scmp.ne.s32.totalorder %s126, %s142
    %p144 = scmp.eq.s32.totalorder %s22, 0
    %p145 = por %p143, %p144
    %p146 = scmp.le.s32.totalorder 1, %s16
    %p147 = scmp.lt.s32.totalorder %s16, 3
    %p148 = pnand %p146, %p147
    %p149 = pneg %p148
    // Predicated region
    $region9: #{tpu_custom_call.1} parent=5 // pred_check
      _
    $region10: #{tpu_custom_call.1} parent=5 // pred_check_branch
      %151 = sbr.rel (%p148) target = $region12
    $region11: #{tpu_custom_call.1} parent=5 // pred_region
      %s152 = ssub.s32 %s16, 1
    $region12: #{tpu_custom_call.1} parent=5 // pred_fallthru
      _
    %p153 = scmp.lt.s32.totalorder %s16, 2
    // Predicated region
    $region13: #{tpu_custom_call.1} parent=5 // pred_check
      %p154 = pneg %p153
    $region14: #{tpu_custom_call.1} parent=5 // pred_check_branch
      %156 = sbr.rel (%p154) target = $region16
    $region15: #{tpu_custom_call.1} parent=5 // pred_region
      // Predicated region
      $region17: #{tpu_custom_call.1} parent=15 // pred_check
        %p157 = pneg %p50
      $region18: #{tpu_custom_call.1} parent=15 // pred_check_branch
        %159 = sbr.rel (%p157) target = $region20
      $region19: #{tpu_custom_call.1} parent=15 // pred_region
        %s160 = smul.u32 6, %s24
        %p161 = scmp.lt.s32.totalorder %s23, 1
        %s162 = scalar_select %p161, %s23, 1
        %p163 = scmp.lt.s32.totalorder %s160, 5
        %s164 = scalar_select %p163, %s160, 5
        %s165 = smul.addr %s162, 6
        %s166 = sadd.s32 %s164, %s165
        %s167 = smul.addr %s166, 8
        %s168 = scalar_lea.vmem %s1, %s167
        %s169 = smul.u32 6, %s24
      $region20: #{tpu_custom_call.1} parent=15 // pred_fallthru
        _
      // Predicated region
      $region21: #{tpu_custom_call.1} parent=15 // pred_check
        %p170 = pneg %p78
      $region22: #{tpu_custom_call.1} parent=15 // pred_check_branch
        %172 = sbr.rel (%p170) target = $region24
      $region23: #{tpu_custom_call.1} parent=15 // pred_region
        %s173 = smul.u32 6, %s24
        %p174 = scmp.lt.s32.totalorder %s23, 1
        %s175 = scalar_select %p174, %s23, 1
        %p176 = scmp.lt.s32.totalorder %s173, 5
        %s177 = scalar_select %p176, %s173, 5
        %s178 = smul.addr %s175, 6
        %s179 = sadd.s32 %s177, %s178
        %s180 = smul.addr %s179, 8
        %s181 = scalar_lea.vmem %s2, %s180
        %s182 = smul.u32 6, %s24
      $region24: #{tpu_custom_call.1} parent=15 // pred_fallthru
        _
      // Predicated region
      $region25: #{tpu_custom_call.1} parent=15 // pred_check
        %p183 = pneg %p106
      $region26: #{tpu_custom_call.1} parent=15 // pred_check_branch
        %185 = sbr.rel (%p183) target = $region28
      $region27: #{tpu_custom_call.1} parent=15 // pred_region
        %p186 = scmp.lt.s32.totalorder %s23, 1
        %s187 = scalar_select %p186, %s23, 1
        %p188 = scmp.lt.s32.totalorder %s24, 0
        %s189 = scalar_select %p188, %s24, 0
        %s190 = smul.addr %s187, 10
        %s191 = sadd.s32 %s189, %s190
        %s192 = smul.addr %s191, 8
        %s193 = scalar_lea.vmem %s3, %s192
      $region28: #{tpu_custom_call.1} parent=15 // pred_fallthru
        _
    $region16: #{tpu_custom_call.1} parent=5 // pred_fallthru
      _
    %p194 = scmp.le.s32.totalorder 1, %s16
    %p195 = scmp.lt.s32.totalorder %s16, 3
    %p196 = pnand %p194, %p195
    %p197 = pneg %p196
    // Predicated region
    $region29: #{tpu_custom_call.1} parent=5 // pred_check
      _
    $region30: #{tpu_custom_call.1} parent=5 // pred_check_branch
      %199 = sbr.rel (%p196) target = $region32
    $region31: #{tpu_custom_call.1} parent=5 // pred_region
      %s200 = ssub.s32 %s16, 1
      %s201 = smul.u32 6, %s26
      %p202 = scmp.lt.s32.totalorder %s25, 1
      %s203 = scalar_select %p202, %s25, 1
      %p204 = scmp.lt.s32.totalorder %s201, 5
      %s205 = scalar_select %p204, %s201, 5
      %s206 = smul.addr %s203, 6
      %s207 = sadd.s32 %s205, %s206
      %s208 = smul.addr %s207, 8
      %s209 = scalar_lea.vmem %s1, %s208
      %p210 = pneg %p56
      %p211 = pneg %p53
      %s212 = smul.u32 6, %s26
      %p213 = scmp.lt.s32.totalorder %s25, 1
      %s214 = scalar_select %p213, %s25, 1
      %p215 = scmp.lt.s32.totalorder %s212, 5
      %s216 = scalar_select %p215, %s212, 5
      %s217 = smul.addr %s214, 6
      %s218 = sadd.s32 %s216, %s217
      %s219 = smul.addr %s218, 8
      %s220 = scalar_lea.vmem %s2, %s219
      %p221 = pneg %p84
      %p222 = pneg %p81
      %p223 = scmp.lt.s32.totalorder %s25, 1
      %s224 = scalar_select %p223, %s25, 1
      %p225 = scmp.lt.s32.totalorder %s26, 0
      %s226 = scalar_select %p225, %s26, 0
      %s227 = smul.addr %s224, 10
      %s228 = sadd.s32 %s226, %s227
      %s229 = smul.addr %s228, 8
      %s230 = scalar_lea.vmem %s3, %s229
      %p231 = pneg %p112
      %p232 = pneg %p109
      %p233 = pneg %p138
      %p234 = pneg %p135
      %p235 = scmp.lt.s32.totalorder %s25, 1
      %s236 = scalar_select %p235, %s25, 1
      %s237 = scalar_lea.vmem %s4, %s236
      %s238 = smul.u32 6, %s26
      %p239 = scmp.lt.s32.totalorder %s25, 1
      %s240 = scalar_select %p239, %s25, 1
      %p241 = scmp.lt.s32.totalorder %s238, 5
      %s242 = scalar_select %p241, %s238, 5
      %s243 = smul.addr %s240, 6
      %s244 = sadd.s32 %s242, %s243
      %s245 = smul.addr %s244, 8
      %s246 = scalar_lea.vmem %s1, %s245
      %s247 = smul.u32 6, %s26
      %s248 = smul.u32 6, %s26
      %p249 = scmp.lt.s32.totalorder %s25, 1
      %s250 = scalar_select %p249, %s25, 1
      %p251 = scmp.lt.s32.totalorder %s248, 5
      %s252 = scalar_select %p251, %s248, 5
      %s253 = smul.addr %s250, 6
      %s254 = sadd.s32 %s252, %s253
      %s255 = smul.addr %s254, 8
      %s256 = scalar_lea.vmem %s2, %s255
      %s257 = smul.u32 6, %s26
      %p258 = scmp.lt.s32.totalorder %s25, 1
      %s259 = scalar_select %p258, %s25, 1
      %p260 = scmp.lt.s32.totalorder %s26, 0
      %s261 = scalar_select %p260, %s26, 0
      %s262 = smul.addr %s259, 10
      %s263 = sadd.s32 %s261, %s262
      %s264 = smul.addr %s263, 8
      %s265 = scalar_lea.vmem %s3, %s264
      %p266 = scmp.lt.s32.totalorder %s25, 1
      %s267 = scalar_select %p266, %s25, 1
      %s268 = scalar_lea.vmem %s4, %s267
      %p269 = scmp.eq.s32.totalorder %s26, 0
      // Predicated region
      $region33: #{tpu_custom_call.1} parent=31 // pred_check
        %p270 = pneg %p269
      $region34: #{tpu_custom_call.1} parent=31 // pred_check_branch
        %272 = sbr.rel (%p270) target = $region36
      $region35: #{tpu_custom_call.1} parent=31 // pred_region
        %vm273 = vcmask 654336
        %274 = vst.msk [vmem:[#allocation2] sm:$0xff] %vm273, 0.0
      $region36: #{tpu_custom_call.1} parent=31 // pred_fallthru
        _
      %s275 = sld [smem:[#allocation4 + %s25]]
      %p276 = scmp.lt.s32.totalorder %s275, 48
      %s277 = scalar_select %p276, %s275, 48
      %s278 = smul.u32 %s26, 48
      %v279 = vlaneseq
      %v280 = vshrl.u32 %v279, 7
      %v281 = vadd.s32 %v280, 8
      %v282 = vadd.s32 %v280, 16
      %v283 = vadd.s32 %v280, 24
      %v284 = vadd.s32 %v280, 32
      %v285 = vadd.s32 %v280, 40
      %v286 = vstv %s278
      %v287 = vadd.s32 %v286, %v280
      %v288 = vadd.s32 %v286, %v281
      %v289 = vadd.s32 %v286, %v282
      %v290 = vadd.s32 %v286, %v283
      %v291 = vadd.s32 %v286, %v284
      %v292 = vadd.s32 %v286, %v285
      %v293 = vstv %s277
      %vm294 = vcmp.lt.s32.totalorder %v287, %v293
      %vm295 = vcmp.lt.s32.totalorder %v288, %v293
      %vm296 = vcmp.lt.s32.totalorder %v289, %v293
      %vm297 = vcmp.lt.s32.totalorder %v290, %v293
      %vm298 = vcmp.lt.s32.totalorder %v291, %v293
      %vm299 = vcmp.lt.s32.totalorder %v292, %v293
      %v300 = vld [vmem:[%s246] sm:$0xff]
      %v301 = vld [vmem:[%s246 + $0x8] sm:$0xff]
      %v302 = vld [vmem:[%s246 + $0x10] sm:$0xff]
      %v303 = vld [vmem:[%s246 + $0x18] sm:$0xff]
      %v304 = vld [vmem:[%s246 + $0x20] sm:$0xff]
      %v305 = vld [vmem:[%s246 + $0x28] sm:$0xff]
      %v306 = vld [vmem:[%s256] sm:$0xff]
      %v307 = vld [vmem:[%s256 + $0x8] sm:$0xff]
      %v308 = vld [vmem:[%s256 + $0x10] sm:$0xff]
      %v309 = vld [vmem:[%s256 + $0x18] sm:$0xff]
      %v310 = vld [vmem:[%s256 + $0x20] sm:$0xff]
      %v311 = vld [vmem:[%s256 + $0x28] sm:$0xff]
      %v312 = vld [vmem:[%s265] sm:$0xff]
      %v313 = vld [vmem:[%s265 + $0x8] sm:$0xff]
      %v314 = vld [vmem:[%s265 + $0x10] sm:$0xff]
      %v315 = vld [vmem:[%s265 + $0x18] sm:$0xff]
      %v316 = vld [vmem:[%s265 + $0x20] sm:$0xff]
      %v317 = vld [vmem:[%s265 + $0x28] sm:$0xff]
      %v318 = vld [vmem:[%s265 + $0x30] sm:$0xff]
      %v319 = vld [vmem:[%s265 + $0x38] sm:$0xff]
      %v320 = vld [vmem:[%s265 + $0x40] sm:$0xff]
      %v321 = vld [vmem:[%s265 + $0x48] sm:$0xff]
      %322 = vxpose.xlu0.b32.start [1/16] %v312, 128
      %323 = vxpose.xlu0.b32.cont [2/16] %v313, 128
      %324 = vxpose.xlu0.b32.cont [3/16] %v314, 128
      %325 = vxpose.xlu0.b32.cont [4/16] %v315, 128
      %326 = vxpose.xlu0.b32.cont [5/16] %v316, 128
      %327 = vxpose.xlu0.b32.cont [6/16] %v317, 128
      %328 = vxpose.xlu0.b32.cont [7/16] %v318, 128
      %329 = vxpose.xlu0.b32.cont [8/16] %v319, 128
      %330 = vxpose.xlu0.b32.cont [9/16] %v320, 128
      %331 = vxpose.xlu0.b32.cont [10/16] %v321, 128
      %332 = vxpose.xlu0.b32.cont [11/16] 0.0, 128
      %333 = vxpose.xlu0.b32.cont [12/16] 0.0, 128
      %334 = vxpose.xlu0.b32.cont [13/16] 0.0, 128
      %335 = vxpose.xlu0.b32.cont [14/16] 0.0, 128
      %336 = vxpose.xlu0.b32.cont [15/16] 0.0, 128
      %337 = vxpose.xlu0.b32.end [16/16] 0.0, 128
      %v338 = vpop.trf.xlu0
      %v339 = vpop.trf.xlu0
      %v340 = vpop.trf.xlu0
      %v341 = vpop.trf.xlu0
      %v342 = vpop.trf.xlu0
      %v343 = vpop.trf.xlu0
      %v344 = vpop.trf.xlu0
      %v345 = vpop.trf.xlu0
      %v346 = vpop.trf.xlu0
      %v347 = vpop.trf.xlu0
      %v348 = vpop.trf.xlu0
      %v349 = vpop.trf.xlu0
      %v350 = vpop.trf.xlu0
      %v351 = vpop.trf.xlu0
      %v352 = vpop.trf.xlu0
      %v353 = vpop.trf.xlu0
      %v354 = vsub.f32 %v300, %v338
      %v355 = vsub.f32 %v301, %v339
      %v356 = vsub.f32 %v302, %v340
      %v357 = vsub.f32 %v303, %v341
      %v358 = vsub.f32 %v304, %v342
      %v359 = vsub.f32 %v305, %v343
      %v360 = vsel %vm294, %v354, 0.0
      %v361 = vsel %vm295, %v355, 0.0
      %v362 = vsel %vm296, %v356, 0.0
      %v363 = vsel %vm297, %v357, 0.0
      %v364 = vsel %vm298, %v358, 0.0
      %v365 = vsel %vm299, %v359, 0.0
      %v366 = vsub.f32 %v306, %v338
      %v367 = vsub.f32 %v307, %v339
      %v368 = vsub.f32 %v308, %v340
      %v369 = vsub.f32 %v309, %v341
      %v370 = vsub.f32 %v310, %v342
      %v371 = vsub.f32 %v311, %v343
      %v372 = vsel %vm294, %v366, 0.0
      %v373 = vsel %vm295, %v367, 0.0
      %v374 = vsel %vm296, %v368, 0.0
      %v375 = vsel %vm297, %v369, 0.0
      %v376 = vsel %vm298, %v370, 0.0
      %v377 = vsel %vm299, %v371, 0.0
      %v378 = vmul.f32 %v360, %v360
      %v379 = vmul.f32 %v361, %v361
      %v380 = vmul.f32 %v362, %v362
      %v381 = vmul.f32 %v363, %v363
      %v382 = vmul.f32 %v364, %v364
      %v383 = vmul.f32 %v365, %v365
      %v384 = vmul.f32 %v372, %v372
      %v385 = vmul.f32 %v373, %v373
      %v386 = vmul.f32 %v374, %v374
      %v387 = vmul.f32 %v375, %v375
      %v388 = vmul.f32 %v376, %v376
      %v389 = vmul.f32 %v377, %v377
      %v390 = vadd.f32 %v378, %v384
      %v391 = vadd.f32 %v379, %v385
      %v392 = vadd.f32 %v380, %v386
      %v393 = vadd.f32 %v381, %v387
      %v394 = vadd.f32 %v382, %v388
      %v395 = vadd.f32 %v383, %v389
      %v396 = vld [vmem:[#allocation2] sm:$0xff]
      %vm397 = vcmask 654336
      %v398 = vsel %vm397, %v390, 0.0
      %v399 = vsel %vm397, %v391, 0.0
      %v400 = vadd.f32 %v398, %v399
      %v401 = vsel %vm397, %v392, 0.0
      %v402 = vadd.f32 %v400, %v401
      %v403 = vsel %vm397, %v393, 0.0
      %v404 = vadd.f32 %v402, %v403
      %v405 = vsel %vm397, %v394, 0.0
      %v406 = vadd.f32 %v404, %v405
      %v407 = vsel %vm397, %v395, 0.0
      %v408 = vadd.f32 %v406, %v407
      %v409 = vadd.f32 %v396, %v408
      %410 = vst.msk [vmem:[#allocation2] sm:$0xff] %vm397, %v409
      // Predicated region
      $region37: #{tpu_custom_call.1} parent=31 // pred_check
        %p411 = pneg %p269
      $region38: #{tpu_custom_call.1} parent=31 // pred_check_branch
        %413 = sbr.rel (%p411) target = $region40
      $region39: #{tpu_custom_call.1} parent=31 // pred_region
        %v414 = vld [vmem:[#allocation2] sm:$0xff]
        %v415 = vsel %vm397, %v414, 0.0
        %416 = vadd.xlane.f32.xlu0 %v415
        %v417 = vpop.xlane.xlu0 %416
        %v418 = vrot.slane %v417, 4
        %v419 = vadd.f32 %v417, %v418
        %v420 = vrot.slane %v419, 2
        %v421 = vadd.f32 %v419, %v420
        %v422 = vrot.slane %v421, 1
        %v423 = vadd.f32 %v421, %v422
        %s424 = vtos %v423
        %s425 = smul.f32 %s424, 0.00013020834
        %v426 = vstv %s425
        %vm427 = vcmask 0
        %428 = vst.msk [vmem:[%s268] sm:$0x1] %vm427, %v426
      $region40: #{tpu_custom_call.1} parent=31 // pred_fallthru
        _
      %p429 = scmp.lt.s32.totalorder %s25, 1
      %s430 = scalar_select %p429, %s25, 1
      %s431 = scalar_lea.vmem %s4, %s430
      // Predicated region
      $region41: #{tpu_custom_call.1} parent=31 // pred_check
        %p432 = pneg %p135
      $region42: #{tpu_custom_call.1} parent=31 // pred_check_branch
        %434 = sbr.rel (%p432) target = $region44
      $region43: #{tpu_custom_call.1} parent=31 // pred_region
        _
      $region44: #{tpu_custom_call.1} parent=31 // pred_fallthru
        _
    $region32: #{tpu_custom_call.1} parent=5 // pred_fallthru
      _
    %p435 = scmp.le.s32.totalorder 2, %s16
    // Predicated region
    $region45: #{tpu_custom_call.1} parent=5 // pred_check
      %p436 = pneg %p435
    $region46: #{tpu_custom_call.1} parent=5 // pred_check_branch
      %438 = sbr.rel (%p436) target = $region48
    $region47: #{tpu_custom_call.1} parent=5 // pred_region
      %s439 = ssub.s32 %s16, 2
      // Predicated region
      $region49: #{tpu_custom_call.1} parent=47 // pred_check
        %p440 = pneg %p141
      $region50: #{tpu_custom_call.1} parent=47 // pred_check_branch
        %442 = sbr.rel (%p440) target = $region52
      $region51: #{tpu_custom_call.1} parent=47 // pred_region
        %p443 = scmp.lt.s32.totalorder %s27, 1
        %s444 = scalar_select %p443, %s27, 1
        %s445 = scalar_lea.vmem %s4, %s444
      $region52: #{tpu_custom_call.1} parent=47 // pred_fallthru
        _
    $region48: #{tpu_custom_call.1} parent=5 // pred_fallthru
      _
  $region6: #{tpu_custom_call.1} parent=0 // loop_footer
    %s20 = sadd.s32 1, %s16
  $region7: #{tpu_custom_call.1} parent=0 // loop_footer_branch
    %15 = sbr.rel target = $region3
  $region8: #{tpu_custom_call.1} parent=0 // loop_exit
    _

</llo_original>
